<compile_context>
chip_gen: v6e
topology: v6e:2x2x1
jax: 0.10.0
libtpu: 0.0.40
codegen_flags: <defaults>
</compile_context>

<pallas_src>
import functools

import jax
import jax.numpy as jnp
from jax.experimental import pallas as pl
from jax.experimental.pallas import tpu as pltpu


ALPHA = 10000.0
EPSILON = 0.001
START_IB_EPOCH = 100


def _round_up(x, m):
    return (x + m - 1) // m * m


def _vmem_budget_bytes():
    """~70% of physical VMEM (v5e/v6e: ~90 MiB, v7x: ~45 MiB), capped at 100 MiB."""
    cap = None
    try:
        cap = getattr(pltpu.get_tpu_info(), "vmem_capacity_bytes", None)
    except Exception:
        cap = None
    if not cap:
        cap = 64 * 1024 * 1024          # conservative (v7x-sized) fallback
    return max(32 * 1024 * 1024, min(int(cap * 0.7), 100 * 1024 * 1024))


def _ib_loss_kernel(logits_ref, target_ref, sw_ref, feats_ref,
                    sum_ib_ref, sum_plain_ref,
                    acc_ib_ref, acc_plain_ref,
                    *, n_valid, tile_n, alpha, epsilon):
    p = pl.program_id(0)                 # megacore chunk ("parallel")
    i = pl.program_id(1)                 # batch tile inside the chunk (reduction)
    tiles_per_chunk = pl.num_programs(1)

    @pl.when(i == 0)
    def _init():
        acc_ib_ref[...] = jnp.zeros_like(acc_ib_ref)
        acc_plain_ref[...] = jnp.zeros_like(acc_plain_ref)

    logits = logits_ref[...].astype(jnp.float32)       # (T, C)
    target = target_ref[...]                           # (T, 1) int32
    sw = sw_ref[...].astype(jnp.float32)               # (T, 1) weight[target]
    feats = feats_ref[...].astype(jnp.float32)         # (T, D)

    t, c = logits.shape

    # Numerically stable log-sum-exp along the class axis.
    m = jnp.max(logits, axis=1, keepdims=True)                 # (T, 1)
    e = jnp.exp(logits - m)
    se = jnp.sum(e, axis=1, keepdims=True)                     # (T, 1)
    logsumexp = jnp.log(se) + m                                # (T, 1)

    # Target logit via a masked select (no f32 one-hot materialized).
    class_ids = jax.lax.broadcasted_iota(jnp.int32, (t, c), 1)
    logit_t = jnp.sum(jnp.where(class_ids == target, logits, 0.0),
                      axis=1, keepdims=True)                   # (T, 1)

    nll = logsumexp - logit_t                                  # (T, 1)

    # sum_c |softmax - onehot| == 2 * (1 - softmax[target])  (exact identity)
    p_t = jnp.exp(logit_t - logsumexp)                         # (T, 1)
    grads = 2.0 * (1.0 - p_t)

    feat_sum = jnp.sum(jnp.abs(feats), axis=1, keepdims=True)  # (T, 1)

    ib = alpha * pl.reciprocal(grads * feat_sum + epsilon, approx=False)

    # Global row index -> masks the ragged tail of the last (possibly clamped)
    # block.  No wrapper-side padding, so OOB rows contain undefined data and
    # MUST be masked before any reduction.
    tile_idx = p * tiles_per_chunk + i
    row = tile_idx * tile_n + jax.lax.broadcasted_iota(jnp.int32, (t, 1), 0)
    valid = row < n_valid

    acc_plain_ref[...] += jnp.sum(jnp.where(valid, nll, 0.0)).reshape(1, 1)
    acc_ib_ref[...] += jnp.sum(jnp.where(valid, sw * nll * ib, 0.0)).reshape(1, 1)

    @pl.when(i == tiles_per_chunk - 1)
    def _finalize():
        sum_ib_ref[...] = acc_ib_ref[...]        # per-chunk partial sums;
        sum_plain_ref[...] = acc_plain_ref[...]  # wrapper sums chunks and divides by N


def ib_loss_forward(logits, target, features, epoch, cls_num_list,
                    alpha=ALPHA, epsilon=EPSILON,
                    start_ib_epoch=START_IB_EPOCH, tile_n=None):
    """JAX/Pallas equivalent of IBLoss.forward."""
    n, c = logits.shape
    d = features.shape[1]

    # weight = 1 / cls_num_list / sum(cls_num_list) * len(cls_num_list)
    cls_num_list = jnp.asarray(cls_num_list, jnp.float32)
    weight = (1.0 / cls_num_list / jnp.sum(cls_num_list) * c).astype(jnp.float32)

    target_i = target.astype(jnp.int32)
    sample_w = weight[target_i].reshape(n, 1)           # host-side (N,1) gather
    target2d = target_i.reshape(n, 1)

    lit = jnp.dtype(logits.dtype).itemsize
    fit = jnp.dtype(features.dtype).itemsize
    # Row-tile multiple keeps the sublane dim legal for the narrowest input dtype.
    row_mult = 8 * max(1, 4 // max(min(lit, fit), 1))

    vmem_budget = _vmem_budget_bytes()

    stream_row = c * lit + d * fit + 8                  # streamed HBM bytes per row
    if tile_n is None:
        # f32 working set per row: ~4 class-tile temps, ~2 feature-tile temps,
        # plus lane-padded (T,1) columns (~8 * 512 B).  Conservative on purpose.
        work_row = 16 * c + 8 * d + 8 * 512
        per_row = 2 * stream_row + work_row             # 2x = double-buffered inputs
        cap_rows = max(row_mult, (vmem_budget // per_row) // row_mult * row_mult)
        # Target >= ~1 MiB streamed per tile (amortizes ~0.35us per grid step).
        target_rows = _round_up(max(1, (1 << 20) // stream_row), row_mult)
        tile_n = min(cap_rows, target_rows, 2048, _round_up(n, row_mult))
        tile_n = max(row_mult, tile_n)
    else:
        tile_n = max(row_mult, _round_up(int(tile_n), row_mult))
        tile_n = min(tile_n, _round_up(n, row_mult))

    num_blocks = pl.cdiv(n, tile_n)
    num_chunks = 2 if num_blocks >= 2 else 1            # batch split for v7x's 2 TCs
    tpc = pl.cdiv(num_blocks, num_chunks)               # tiles per chunk
    nb_last = num_blocks - 1

    # Clamp out-of-range (chunk, tile) combos onto the last real block; their rows
    # are >= n so the in-kernel mask drops them (no double counting).
    def row_block_map(p, i):
        return (jnp.minimum(p * tpc + i, nb_last), 0)

    kernel = functools.partial(
        _ib_loss_kernel, n_valid=n, tile_n=tile_n,
        alpha=float(alpha), epsilon=float(epsilon))

    bytes_accessed = n * stream_row + c * 4 + 4 * num_chunks * 2
    cost = pl.CostEstimate(
        flops=int(n * (6 * c + 2 * d + 16)),
        transcendentals=int(n * (c + 2)),
        bytes_accessed=int(bytes_accessed))

    sum_ib, sum_plain = pl.pallas_call(
        kernel,
        out_shape=(jax.ShapeDtypeStruct((num_chunks, 1), jnp.float32),
                   jax.ShapeDtypeStruct((num_chunks, 1), jnp.float32)),
        grid=(num_chunks, tpc),
        in_specs=[
            pl.BlockSpec((tile_n, c), row_block_map),
            pl.BlockSpec((tile_n, 1), row_block_map),
            pl.BlockSpec((tile_n, 1), row_block_map),
            pl.BlockSpec((tile_n, d), row_block_map),
        ],
        out_specs=(
            pl.BlockSpec((1, 1), lambda p, i: (p, 0)),
            pl.BlockSpec((1, 1), lambda p, i: (p, 0)),
        ),
        scratch_shapes=[pltpu.VMEM((1, 1), jnp.float32),
                        pltpu.VMEM((1, 1), jnp.float32)],
        compiler_params=pltpu.CompilerParams(
            dimension_semantics=("parallel", "arbitrary"),
            vmem_limit_bytes=int(vmem_budget)),
        cost_estimate=cost,
    )(logits, target2d, sample_w, features)

    use_ib = jnp.asarray(epoch) >= start_ib_epoch
    total = jnp.where(use_ib, jnp.sum(sum_ib), jnp.sum(sum_plain))
    return total / n


def _reference(logits, target, features, epoch, cls_num_list,
               alpha=ALPHA, epsilon=EPSILON, start_ib_epoch=START_IB_EPOCH):
    """Pure-JAX reference mirroring the PyTorch IBLoss.forward."""
    n, c = logits.shape
    cls_num_list = jnp.asarray(cls_num_list, jnp.float32)
    weight = 1.0 / cls_num_list / jnp.sum(cls_num_list) * c
    logits = logits.astype(jnp.float32)
    logp = jax.nn.log_softmax(logits, axis=1)
    nll = -jnp.take_along_axis(logp, target[:, None].astype(jnp.int32), axis=1)[:, 0]
    if epoch >= start_ib_epoch:
        feat_sum = jnp.sum(jnp.abs(features.astype(jnp.float32)), axis=1)
        onehot = jax.nn.one_hot(target, c)
        grads = jnp.sum(jnp.abs(jax.nn.softmax(logits, axis=1) - onehot), axis=1)
        ib = alpha / (grads * feat_sum + epsilon)
        ce_w = weight[target] * nll
        return jnp.mean(ce_w * ib)
    return jnp.mean(nll)


if __name__ == "__main__":
    key = jax.random.PRNGKey(0)
    k1, k2, k3 = jax.random.split(key, 3)

    N, C, D = 13, 4, 32      # non-multiple-of-8 batch exercises the ragged tail
    logits = jax.random.normal(k1, (N, C), dtype=jnp.float32)
    target = jax.random.randint(k2, (N,), 0, C, dtype=jnp.int32)
    features = jax.random.normal(k3, (N, D), dtype=jnp.float32)
    cls_num_list = jnp.array([100.0, 50.0, 20.0, 10.0], dtype=jnp.float32)

    # IB-weighted branch (epoch >= start_ib_epoch).
    out_ib = jax.block_until_ready(
        ib_loss_forward(logits, target, features, 150, cls_num_list))
    ref_ib = _reference(logits, target, features, 150, cls_num_list)
    assert jnp.allclose(out_ib, ref_ib, rtol=2e-3, atol=1e-5), (out_ib, ref_ib)

    # Plain-CE branch (epoch < start_ib_epoch).
    out_ce = jax.block_until_ready(
        ib_loss_forward(logits, target, features, 10, cls_num_list))
    ref_ce = _reference(logits, target, features, 10, cls_num_list)
    assert jnp.allclose(out_ce, ref_ce, rtol=1e-4, atol=1e-6), (out_ce, ref_ce)

    # Multi-tile path: 2 ragged blocks -> 2 'parallel' chunks, accumulator carry,
    # tail masking, and the wrapper-side partial-sum combine.
    out_mt = jax.block_until_ready(
        ib_loss_forward(logits, target, features, 150, cls_num_list, tile_n=8))
    assert jnp.allclose(out_mt, ref_ib, rtol=2e-3, atol=1e-5), (out_mt, ref_ib)

    print("KERNEL_OK")
</pallas_src>

<mosaic_0001>
module attributes {stable_mosaic.version = 11 : i64} {
  func.func @_ib_loss_kernel(%arg0: i32, %arg1: i32, %arg2: memref<16x4xf32, #tpu.memory_space<vmem>>, %arg3: memref<16x1xi32, #tpu.memory_space<vmem>>, %arg4: memref<16x1xf32, #tpu.memory_space<vmem>>, %arg5: memref<16x32xf32, #tpu.memory_space<vmem>>, %arg6: memref<1x1xf32, #tpu.memory_space<vmem>>, %arg7: memref<1x1xf32, #tpu.memory_space<vmem>>, %arg8: memref<1x1xf32, #tpu.memory_space<vmem>>, %arg9: memref<1x1xf32, #tpu.memory_space<vmem>>) attributes {dimension_semantics = [#tpu.dimension_semantics<parallel>, #tpu.dimension_semantics<arbitrary>], iteration_bounds = array<i64: 1, 1>, scalar_prefetch = 0 : i64, scratch_operands = 2 : i64, tpu.core_type = #tpu.core_type<tc>, window_params = [{transform_indices = @transform_0, window_bounds = array<i64: 16, 4>}, {transform_indices = @transform_1, window_bounds = array<i64: 16, 1>}, {transform_indices = @transform_2, window_bounds = array<i64: 16, 1>}, {transform_indices = @transform_3, window_bounds = array<i64: 16, 32>}, {transform_indices = @transform_4, window_bounds = array<i64: 1, 1>}, {transform_indices = @transform_5, window_bounds = array<i64: 1, 1>}]} {
    %c0_i32 = arith.constant 0 : i32
    %0 = arith.cmpi eq, %arg1, %c0_i32 : i32
    %1 = arith.extui %0 : i1 to i32
    %c0_i32_0 = arith.constant 0 : i32
    %2 = arith.cmpi ne, %1, %c0_i32_0 : i32
    scf.if %2 {
      %cst_30 = arith.constant 0.000000e+00 : f32
      %72 = vector.broadcast %cst_30 : f32 to vector<1x1xf32>
      %c0_31 = arith.constant 0 : index
      %c0_32 = arith.constant 0 : index
      %73 = vector.load %arg8[%c0_31, %c0_32] : memref<1x1xf32, #tpu.memory_space<vmem>>, vector<1x1xf32>
      tpu.vector_store %arg8[%c0_31, %c0_32], %72 {strides = array<i32>} : memref<1x1xf32, #tpu.memory_space<vmem>>, vector<1x1xf32>,
      %cst_33 = arith.constant 0.000000e+00 : f32
      %74 = vector.broadcast %cst_33 : f32 to vector<1x1xf32>
      %c0_34 = arith.constant 0 : index
      %c0_35 = arith.constant 0 : index
      %75 = vector.load %arg9[%c0_34, %c0_35] : memref<1x1xf32, #tpu.memory_space<vmem>>, vector<1x1xf32>
      tpu.vector_store %arg9[%c0_34, %c0_35], %74 {strides = array<i32>} : memref<1x1xf32, #tpu.memory_space<vmem>>, vector<1x1xf32>,
    } else {
    }
    %c0 = arith.constant 0 : index
    %c0_1 = arith.constant 0 : index
    %3 = vector.load %arg2[%c0, %c0_1] : memref<16x4xf32, #tpu.memory_space<vmem>>, vector<16x4xf32>
    %c0_2 = arith.constant 0 : index
    %c0_3 = arith.constant 0 : index
    %4 = vector.load %arg3[%c0_2, %c0_3] : memref<16x1xi32, #tpu.memory_space<vmem>>, vector<16x1xi32>
    %c0_4 = arith.constant 0 : index
    %c0_5 = arith.constant 0 : index
    %5 = vector.load %arg4[%c0_4, %c0_5] : memref<16x1xf32, #tpu.memory_space<vmem>>, vector<16x1xf32>
    %c0_6 = arith.constant 0 : index
    %c0_7 = arith.constant 0 : index
    %6 = vector.load %arg5[%c0_6, %c0_7] : memref<16x32xf32, #tpu.memory_space<vmem>>, vector<16x32xf32>
    %cst = arith.constant dense<0xFF800000> : vector<16xf32>
    %7 = vector.multi_reduction <maximumf>, %3, %cst [1] : vector<16x4xf32> to vector<16xf32>
    %8 = vector.shape_cast %7 : vector<16xf32> to vector<16x1xf32>
    %9 = vector.broadcast %8 : vector<16x1xf32> to vector<16x4xf32>
    %10 = arith.subf %3, %9 : vector<16x4xf32>
    %11 = math.exp %10 : vector<16x4xf32>
    %cst_8 = arith.constant dense<0.000000e+00> : vector<16xf32>
    %12 = vector.multi_reduction <add>, %11, %cst_8 [1] : vector<16x4xf32> to vector<16xf32>
    %13 = vector.shape_cast %12 : vector<16xf32> to vector<16x1xf32>
    %14 = math.log %13 : vector<16x1xf32>
    %15 = arith.addf %14, %8 : vector<16x1xf32>
    %16 = tpu.iota {dimensions = array<i32: 1>} : vector<16x4xi32>
    %17 = vector.broadcast %4 : vector<16x1xi32> to vector<16x4xi32>
    %18 = arith.cmpi eq, %16, %17 : vector<16x4xi32>
    %cst_9 = arith.constant 0.000000e+00 : f32
    %19 = vector.broadcast %cst_9 : f32 to vector<16x4xf32>
    %20 = arith.select %18, %3, %19 : vector<16x4xi1>, vector<16x4xf32>
    %cst_10 = arith.constant dense<0.000000e+00> : vector<16xf32>
    %21 = vector.multi_reduction <add>, %20, %cst_10 [1] : vector<16x4xf32> to vector<16xf32>
    %22 = vector.shape_cast %21 : vector<16xf32> to vector<16x1xf32>
    %23 = arith.subf %15, %22 : vector<16x1xf32>
    %24 = arith.subf %22, %15 : vector<16x1xf32>
    %25 = math.exp %24 : vector<16x1xf32>
    %cst_11 = arith.constant 1.000000e+00 : f32
    %26 = vector.broadcast %cst_11 : f32 to vector<16x1xf32>
    %27 = arith.subf %26, %25 : vector<16x1xf32>
    %cst_12 = arith.constant 2.000000e+00 : f32
    %28 = vector.broadcast %cst_12 : f32 to vector<16x1xf32>
    %29 = arith.mulf %28, %27 : vector<16x1xf32>
    %30 = math.absf %6 : vector<16x32xf32>
    %cst_13 = arith.constant dense<0.000000e+00> : vector<16xf32>
    %31 = vector.multi_reduction <add>, %30, %cst_13 [1] : vector<16x32xf32> to vector<16xf32>
    %32 = vector.shape_cast %31 : vector<16xf32> to vector<16x1xf32>
    %33 = arith.mulf %29, %32 : vector<16x1xf32>
    %cst_14 = arith.constant 1.000000e-03 : f32
    %34 = vector.broadcast %cst_14 : f32 to vector<16x1xf32>
    %35 = arith.addf %33, %34 : vector<16x1xf32>
    %36 = tpu.reciprocal %35 : vector<16x1xf32> -> vector<16x1xf32>
    %cst_15 = arith.constant 1.000000e+04 : f32
    %37 = vector.broadcast %cst_15 : f32 to vector<16x1xf32>
    %38 = arith.mulf %37, %36 : vector<16x1xf32>
    %c1_i32 = arith.constant 1 : i32
    %39 = arith.muli %arg0, %c1_i32 : i32
    %40 = arith.addi %39, %arg1 : i32
    %c16_i32 = arith.constant 16 : i32
    %41 = arith.muli %40, %c16_i32 : i32
    %42 = tpu.iota {dimensions = array<i32: 0>} : vector<16x1xi32>
    %43 = vector.broadcast %41 : i32 to vector<16x1xi32>
    %44 = arith.addi %43, %42 : vector<16x1xi32>
    %c13_i32 = arith.constant 13 : i32
    %45 = vector.broadcast %c13_i32 : i32 to vector<16x1xi32>
    %46 = arith.cmpi slt, %44, %45 : vector<16x1xi32>
    %c0_16 = arith.constant 0 : index
    %c0_17 = arith.constant 0 : index
    %47 = vector.load %arg9[%c0_16, %c0_17] : memref<1x1xf32, #tpu.memory_space<vmem>>, vector<1x1xf32>
    %cst_18 = arith.constant 0.000000e+00 : f32
    %48 = vector.broadcast %cst_18 : f32 to vector<16x1xf32>
    %49 = arith.select %46, %23, %48 : vector<16x1xi1>, vector<16x1xf32>
    %50 = vector.shape_cast %49 : vector<16x1xf32> to vector<1x16x1xf32>
    %cst_19 = arith.constant dense<0.000000e+00> : vector<1xf32>
    %51 = vector.multi_reduction <add>, %50, %cst_19 [1, 2] : vector<1x16x1xf32> to vector<1xf32>
    %52 = vector.shape_cast %51 : vector<1xf32> to vector<1x1x1xf32>
    %53 = vector.extract %52[0, 0, 0] : f32 from vector<1x1x1xf32>
    %54 = vector.broadcast %53 : f32 to vector<1x1xf32>
    %55 = arith.addf %47, %54 : vector<1x1xf32>
    %c0_20 = arith.constant 0 : index
    %c0_21 = arith.constant 0 : index
    %56 = vector.load %arg9[%c0_20, %c0_21] : memref<1x1xf32, #tpu.memory_space<vmem>>, vector<1x1xf32>
    tpu.vector_store %arg9[%c0_20, %c0_21], %55 {strides = array<i32>} : memref<1x1xf32, #tpu.memory_space<vmem>>, vector<1x1xf32>,
    %c0_22 = arith.constant 0 : index
    %c0_23 = arith.constant 0 : index
    %57 = vector.load %arg8[%c0_22, %c0_23] : memref<1x1xf32, #tpu.memory_space<vmem>>, vector<1x1xf32>
    %58 = arith.mulf %5, %23 : vector<16x1xf32>
    %59 = arith.mulf %58, %38 : vector<16x1xf32>
    %cst_24 = arith.constant 0.000000e+00 : f32
    %60 = vector.broadcast %cst_24 : f32 to vector<16x1xf32>
    %61 = arith.select %46, %59, %60 : vector<16x1xi1>, vector<16x1xf32>
    %62 = vector.shape_cast %61 : vector<16x1xf32> to vector<1x16x1xf32>
    %cst_25 = arith.constant dense<0.000000e+00> : vector<1xf32>
    %63 = vector.multi_reduction <add>, %62, %cst_25 [1, 2] : vector<1x16x1xf32> to vector<1xf32>
    %64 = vector.shape_cast %63 : vector<1xf32> to vector<1x1x1xf32>
    %65 = vector.extract %64[0, 0, 0] : f32 from vector<1x1x1xf32>
    %66 = vector.broadcast %65 : f32 to vector<1x1xf32>
    %67 = arith.addf %57, %66 : vector<1x1xf32>
    %c0_26 = arith.constant 0 : index
    %c0_27 = arith.constant 0 : index
    %68 = vector.load %arg8[%c0_26, %c0_27] : memref<1x1xf32, #tpu.memory_space<vmem>>, vector<1x1xf32>
    tpu.vector_store %arg8[%c0_26, %c0_27], %67 {strides = array<i32>} : memref<1x1xf32, #tpu.memory_space<vmem>>, vector<1x1xf32>,
    %c0_i32_28 = arith.constant 0 : i32
    %69 = arith.cmpi eq, %arg1, %c0_i32_28 : i32
    %70 = arith.extui %69 : i1 to i32
    %c0_i32_29 = arith.constant 0 : i32
    %71 = arith.cmpi ne, %70, %c0_i32_29 : i32
    scf.if %71 {
      %c0_30 = arith.constant 0 : index
      %c0_31 = arith.constant 0 : index
      %72 = vector.load %arg8[%c0_30, %c0_31] : memref<1x1xf32, #tpu.memory_space<vmem>>, vector<1x1xf32>
      %c0_32 = arith.constant 0 : index
      %c0_33 = arith.constant 0 : index
      %73 = vector.load %arg6[%c0_32, %c0_33] : memref<1x1xf32, #tpu.memory_space<vmem>>, vector<1x1xf32>
      tpu.vector_store %arg6[%c0_32, %c0_33], %72 {strides = array<i32>} : memref<1x1xf32, #tpu.memory_space<vmem>>, vector<1x1xf32>,
      %c0_34 = arith.constant 0 : index
      %c0_35 = arith.constant 0 : index
      %74 = vector.load %arg9[%c0_34, %c0_35] : memref<1x1xf32, #tpu.memory_space<vmem>>, vector<1x1xf32>
      %c0_36 = arith.constant 0 : index
      %c0_37 = arith.constant 0 : index
      %75 = vector.load %arg7[%c0_36, %c0_37] : memref<1x1xf32, #tpu.memory_space<vmem>>, vector<1x1xf32>
      tpu.vector_store %arg7[%c0_36, %c0_37], %74 {strides = array<i32>} : memref<1x1xf32, #tpu.memory_space<vmem>>, vector<1x1xf32>,
    } else {
    }
    return
  }
  func.func @transform_0(%arg0: i32, %arg1: i32) -> (i32, i32) {
    %c1_i32 = arith.constant 1 : i32
    %0 = arith.muli %arg0, %c1_i32 : i32
    %1 = arith.addi %0, %arg1 : i32
    %c0_i32 = arith.constant 0 : i32
    %2 = arith.minsi %1, %c0_i32 : i32
    %c0_i32_0 = arith.constant 0 : i32
    %c0_i32_1 = arith.constant 0 : i32
    return %2, %c0_i32_0 : i32, i32
  }
  func.func @transform_1(%arg0: i32, %arg1: i32) -> (i32, i32) {
    %c1_i32 = arith.constant 1 : i32
    %0 = arith.muli %arg0, %c1_i32 : i32
    %1 = arith.addi %0, %arg1 : i32
    %c0_i32 = arith.constant 0 : i32
    %2 = arith.minsi %1, %c0_i32 : i32
    %c0_i32_0 = arith.constant 0 : i32
    %c0_i32_1 = arith.constant 0 : i32
    return %2, %c0_i32_0 : i32, i32
  }
  func.func @transform_2(%arg0: i32, %arg1: i32) -> (i32, i32) {
    %c1_i32 = arith.constant 1 : i32
    %0 = arith.muli %arg0, %c1_i32 : i32
    %1 = arith.addi %0, %arg1 : i32
    %c0_i32 = arith.constant 0 : i32
    %2 = arith.minsi %1, %c0_i32 : i32
    %c0_i32_0 = arith.constant 0 : i32
    %c0_i32_1 = arith.constant 0 : i32
    return %2, %c0_i32_0 : i32, i32
  }
  func.func @transform_3(%arg0: i32, %arg1: i32) -> (i32, i32) {
    %c1_i32 = arith.constant 1 : i32
    %0 = arith.muli %arg0, %c1_i32 : i32
    %1 = arith.addi %0, %arg1 : i32
    %c0_i32 = arith.constant 0 : i32
    %2 = arith.minsi %1, %c0_i32 : i32
    %c0_i32_0 = arith.constant 0 : i32
    %c0_i32_1 = arith.constant 0 : i32
    return %2, %c0_i32_0 : i32, i32
  }
  func.func @transform_4(%arg0: i32, %arg1: i32) -> (i32, i32) {
    %c0_i32 = arith.constant 0 : i32
    %c0_i32_0 = arith.constant 0 : i32
    return %arg0, %c0_i32 : i32, i32
  }
  func.func @transform_5(%arg0: i32, %arg1: i32) -> (i32, i32) {
    %c0_i32 = arith.constant 0 : i32
    %c0_i32_0 = arith.constant 0 : i32
    return %arg0, %c0_i32 : i32, i32
  }
}

</mosaic_0001>

<llo_original>
// kernel: tpu_custom_call.1
$region0: #{tpu_custom_call.1}
  #allocation0 [shape = 'u32[]', space=smem, size = 0x4, offset = 0x4, fixed_abs, tag = 'smem constant byte address 0x4 - core index']
  #allocation1 [shape = 'u32[144,128]{1,0:T(1,128)}', space=vmem, size = 0x12000, scoped, tag = 'internal scratch']
  #allocation2 [shape = 'f32[1,1]{1,0:T(1,128)}', space=vmem, size = 0x200, scoped, tag = 'scratch operand']
  #allocation3 [shape = 'f32[1,1]{1,0:T(1,128)}', space=vmem, size = 0x200, scoped, tag = 'scratch operand']
  %s0 = inlined_call_operand.vmem [shape: f32[13,4], index: 0, kind: input, shape index: {}]
  %s1 = inlined_call_operand.vmem [shape: s32[13,1], index: 1, kind: input, shape index: {}]
  %s2 = inlined_call_operand.vmem [shape: f32[13,1], index: 2, kind: input, shape index: {}]
  %s3 = inlined_call_operand.vmem [shape: f32[13,32], index: 3, kind: input, shape index: {}]
  %s4 = inlined_call_operand.hbm [shape: f32[1,1], index: 4, kind: output, shape index: {0}]
  %s5 = inlined_call_operand.hbm [shape: f32[1,1], index: 5, kind: output, shape index: {1}]
  %6 = xla_tuple %s4, %s5
  %s7 = sld [smem:[#allocation0]]
  $region42: #{tpu_custom_call.1} parent=0
    _
  %s9 = ssub.s32 1, %s7
  %s10 = scalar_select 0, %s9, %s7
  $region1: #{tpu_custom_call.1} parent=0
    #allocation4 [shape = 'u8[512]{0}', space=vmem, size = 0x400, scoped, tag = 'output window, operand 0, single buffered']
    #allocation5 [shape = 's32[1]{0}', space=sflag, size = 0x4, scoped, tag = 'scoped memory for tpu_custom_call.1']
    #allocation6 [shape = 'u8[512]{0}', space=vmem, size = 0x400, scoped, tag = 'output window, operand 1, single buffered']
    #allocation7 [shape = 's32[1]{0}', space=sflag, size = 0x4, scoped, tag = 'scoped memory for tpu_custom_call.1']
    %11 = vsyncpa [#allocation5], 0
    %12 = vsyncpa [#allocation7], 0
    // Predicated region
    $region2: #{tpu_custom_call.1} parent=1 // pred_check
      _
    $region3: #{tpu_custom_call.1} parent=1 // pred_check_branch
      %14 = sbr.rel (0) target = $region5
    $region4: #{tpu_custom_call.1} parent=1 // pred_region
      %s15 = sadd.s32 0, 0
      %p16 = scmp.lt.s32.totalorder %s15, 0
      %s17 = scalar_select %p16, %s15, 0
      %s18 = smul.u32 2, %s17
      %p19 = scmp.lt.s32.totalorder %s18, 1
      %s20 = scalar_select %p19, %s18, 1
      %s21 = smul.addr %s20, 8
      %s22 = scalar_lea.vmem %s0, %s21
      %s23 = sadd.s32 0, 0
      %p24 = scmp.lt.s32.totalorder %s23, 0
      %s25 = scalar_select %p24, %s23, 0
      %s26 = smul.u32 2, %s25
    $region5: #{tpu_custom_call.1} parent=1 // pred_fallthru
      _
    // Predicated region
    $region6: #{tpu_custom_call.1} parent=1 // pred_check
      _
    $region7: #{tpu_custom_call.1} parent=1 // pred_check_branch
      %28 = sbr.rel (0) target = $region9
    $region8: #{tpu_custom_call.1} parent=1 // pred_region
      %s29 = sadd.s32 0, 0
      %p30 = scmp.lt.s32.totalorder %s29, 0
      %s31 = scalar_select %p30, %s29, 0
      %s32 = smul.u32 2, %s31
      %p33 = scmp.lt.s32.totalorder %s32, 1
      %s34 = scalar_select %p33, %s32, 1
      %s35 = smul.addr %s34, 8
      %s36 = scalar_lea.vmem %s1, %s35
      %s37 = sadd.s32 0, 0
      %p38 = scmp.lt.s32.totalorder %s37, 0
      %s39 = scalar_select %p38, %s37, 0
      %s40 = smul.u32 2, %s39
    $region9: #{tpu_custom_call.1} parent=1 // pred_fallthru
      _
    // Predicated region
    $region10: #{tpu_custom_call.1} parent=1 // pred_check
      _
    $region11: #{tpu_custom_call.1} parent=1 // pred_check_branch
      %42 = sbr.rel (0) target = $region13
    $region12: #{tpu_custom_call.1} parent=1 // pred_region
      %s43 = sadd.s32 0, 0
      %p44 = scmp.lt.s32.totalorder %s43, 0
      %s45 = scalar_select %p44, %s43, 0
      %s46 = smul.u32 2, %s45
      %p47 = scmp.lt.s32.totalorder %s46, 1
      %s48 = scalar_select %p47, %s46, 1
      %s49 = smul.addr %s48, 8
      %s50 = scalar_lea.vmem %s2, %s49
      %s51 = sadd.s32 0, 0
      %p52 = scmp.lt.s32.totalorder %s51, 0
      %s53 = scalar_select %p52, %s51, 0
      %s54 = smul.u32 2, %s53
    $region13: #{tpu_custom_call.1} parent=1 // pred_fallthru
      _
    // Predicated region
    $region14: #{tpu_custom_call.1} parent=1 // pred_check
      _
    $region15: #{tpu_custom_call.1} parent=1 // pred_check_branch
      %56 = sbr.rel (0) target = $region17
    $region16: #{tpu_custom_call.1} parent=1 // pred_region
      %s57 = sadd.s32 0, 0
      %p58 = scmp.lt.s32.totalorder %s57, 0
      %s59 = scalar_select %p58, %s57, 0
      %s60 = smul.u32 2, %s59
      %p61 = scmp.lt.s32.totalorder %s60, 1
      %s62 = scalar_select %p61, %s60, 1
      %s63 = smul.addr %s62, 8
      %s64 = scalar_lea.vmem %s3, %s63
      %s65 = sadd.s32 0, 0
      %p66 = scmp.lt.s32.totalorder %s65, 0
      %s67 = scalar_select %p66, %s65, 0
      %s68 = smul.u32 2, %s67
    $region17: #{tpu_custom_call.1} parent=1 // pred_fallthru
      _
    %s69 = sadd.s32 0, 0
    %p70 = scmp.lt.s32.totalorder %s69, 0
    %s71 = scalar_select %p70, %s69, 0
    %s72 = smul.u32 2, %s71
    %p73 = scmp.lt.s32.totalorder %s72, 1
    %s74 = scalar_select %p73, %s72, 1
    %s75 = smul.addr %s74, 8
    %s76 = scalar_lea.vmem %s0, %s75
    %s77 = sadd.s32 0, 0
    %p78 = scmp.lt.s32.totalorder %s77, 0
    %s79 = scalar_select %p78, %s77, 0
    %s80 = smul.u32 2, %s79
    %p81 = scmp.lt.s32.totalorder %s80, 1
    %s82 = scalar_select %p81, %s80, 1
    %s83 = smul.addr %s82, 8
    %s84 = scalar_lea.vmem %s1, %s83
    %s85 = sadd.s32 0, 0
    %p86 = scmp.lt.s32.totalorder %s85, 0
    %s87 = scalar_select %p86, %s85, 0
    %s88 = smul.u32 2, %s87
    %p89 = scmp.lt.s32.totalorder %s88, 1
    %s90 = scalar_select %p89, %s88, 1
    %s91 = smul.addr %s90, 8
    %s92 = scalar_lea.vmem %s2, %s91
    %s93 = sadd.s32 0, 0
    %p94 = scmp.lt.s32.totalorder %s93, 0
    %s95 = scalar_select %p94, %s93, 0
    %s96 = smul.u32 2, %s95
    %p97 = scmp.lt.s32.totalorder %s96, 1
    %s98 = scalar_select %p97, %s96, 1
    %s99 = smul.addr %s98, 8
    %s100 = scalar_lea.vmem %s3, %s99
    %s101 = sadd.s32 0, 0
    %p102 = scmp.lt.s32.totalorder %s101, 0
    %s103 = scalar_select %p102, %s101, 0
    %s104 = smul.u32 2, %s103
    %p105 = scmp.lt.s32.totalorder %s104, 1
    %s106 = scalar_select %p105, %s104, 1
    %s107 = smul.addr %s106, 8
    %s108 = scalar_lea.vmem %s0, %s107
    %s109 = sadd.s32 0, 0
    %p110 = scmp.lt.s32.totalorder %s109, 0
    %s111 = scalar_select %p110, %s109, 0
    %s112 = smul.u32 2, %s111
    %s113 = sadd.s32 0, 0
    %p114 = scmp.lt.s32.totalorder %s113, 0
    %s115 = scalar_select %p114, %s113, 0
    %s116 = smul.u32 2, %s115
    %p117 = scmp.lt.s32.totalorder %s116, 1
    %s118 = scalar_select %p117, %s116, 1
    %s119 = smul.addr %s118, 8
    %s120 = scalar_lea.vmem %s1, %s119
    %s121 = sadd.s32 0, 0
    %p122 = scmp.lt.s32.totalorder %s121, 0
    %s123 = scalar_select %p122, %s121, 0
    %s124 = smul.u32 2, %s123
    %s125 = sadd.s32 0, 0
    %p126 = scmp.lt.s32.totalorder %s125, 0
    %s127 = scalar_select %p126, %s125, 0
    %s128 = smul.u32 2, %s127
    %p129 = scmp.lt.s32.totalorder %s128, 1
    %s130 = scalar_select %p129, %s128, 1
    %s131 = smul.addr %s130, 8
    %s132 = scalar_lea.vmem %s2, %s131
    %s133 = sadd.s32 0, 0
    %p134 = scmp.lt.s32.totalorder %s133, 0
    %s135 = scalar_select %p134, %s133, 0
    %s136 = smul.u32 2, %s135
    %s137 = sadd.s32 0, 0
    %p138 = scmp.lt.s32.totalorder %s137, 0
    %s139 = scalar_select %p138, %s137, 0
    %s140 = smul.u32 2, %s139
    %p141 = scmp.lt.s32.totalorder %s140, 1
    %s142 = scalar_select %p141, %s140, 1
    %s143 = smul.addr %s142, 8
    %s144 = scalar_lea.vmem %s3, %s143
    %s145 = sadd.s32 0, 0
    %p146 = scmp.lt.s32.totalorder %s145, 0
    %s147 = scalar_select %p146, %s145, 0
    %s148 = smul.u32 2, %s147
    %p149 = scmp.eq.s32.totalorder 0, 0
    // Predicated region
    $region18: #{tpu_custom_call.1} parent=1 // pred_check
      %p150 = pneg %p149
    $region19: #{tpu_custom_call.1} parent=1 // pred_check_branch
      %152 = sbr.rel (%p150) target = $region21
    $region20: #{tpu_custom_call.1} parent=1 // pred_region
      %vm153 = vcmask 0
      %154 = vst.msk [vmem:[#allocation2] sm:$0x1] %vm153, 0.0
      %155 = vst.msk [vmem:[#allocation3] sm:$0x1] %vm153, 0.0
    $region21: #{tpu_custom_call.1} parent=1 // pred_fallthru
      _
    %v156 = vld [vmem:[%s108] sm:$0xff]
    %v157 = vld [vmem:[%s108 + $0x8] sm:$0xff]
    %v158 = vld [vmem:[%s120] sm:$0xff]
    %v159 = vld [vmem:[%s120 + $0x8] sm:$0xff]
    %v160 = vld [vmem:[%s132] sm:$0xff]
    %v161 = vld [vmem:[%s132 + $0x8] sm:$0xff]
    %v162 = vld [vmem:[%s144] sm:$0xff]
    %v163 = vld [vmem:[%s144 + $0x8] sm:$0xff]
    %vm164 = vcmask 31744
    %v165 = vsel %vm164, %v156, -inf
    %166 = vmax.xlane.f32.xlu0 %v165
    %v167 = vpop.xlane.xlu0 %166
    %v168 = vsel %vm164, %v157, -inf
    %169 = vmax.xlane.f32.xlu0 %v168
    %v170 = vpop.xlane.xlu0 %169
    %v171 = vsub.f32 %v156, %v167
    %v172 = vsub.f32 %v157, %v170
    %v173 = vmul.f32 %v171, 1.442695
    %v174 = vpow.pop %v173
    %v175 = vmul.f32 %v172, 1.442695
    %v176 = vpow.pop %v175
    %v177 = vsel %vm164, %v174, 0.0
    %178 = vadd.xlane.f32.xlu0 %v177
    %v179 = vpop.xlane.xlu0 %178
    %v180 = vsel %vm164, %v176, 0.0
    %181 = vadd.xlane.f32.xlu0 %v180
    %v182 = vpop.xlane.xlu0 %181
    %v183 = vlog2.pop %v179
    %v184 = vmul.f32 %v183, 0.6931472
    %v185 = vlog2.pop %v182
    %v186 = vmul.f32 %v185, 0.6931472
    %v187 = vadd.f32 %v184, %v167
    %v188 = vadd.f32 %v186, %v170
    %v189 = vlaneseq
    %v190 = vand.u32 %v189, 127
    %191 = vset.pattern.permute.xlu0 0
    %192 = vperm.xlu0 %191, %v158
    %v193 = vpop.permute.xlu0 %192
    %194 = vset.pattern.permute.xlu0 0
    %195 = vperm.xlu0 %194, %v159
    %v196 = vpop.permute.xlu0 %195
    %vm197 = vcmp.eq.s32.totalorder %v190, %v193
    %vm198 = vcmp.eq.s32.totalorder %v190, %v196
    %v199 = vsel %vm197, %v156, 0.0
    %v200 = vsel %vm198, %v157, 0.0
    %v201 = vsel %vm164, %v199, 0.0
    %202 = vadd.xlane.f32.xlu0 %v201
    %v203 = vpop.xlane.xlu0 %202
    %v204 = vsel %vm164, %v200, 0.0
    %205 = vadd.xlane.f32.xlu0 %v204
    %v206 = vpop.xlane.xlu0 %205
    %v207 = vsub.f32 %v187, %v203
    %v208 = vsub.f32 %v188, %v206
    %v209 = vsub.f32 %v203, %v187
    %v210 = vsub.f32 %v206, %v188
    %v211 = vmul.f32 %v209, 1.442695
    %v212 = vpow.pop %v211
    %v213 = vmul.f32 %v210, 1.442695
    %v214 = vpow.pop %v213
    %v215 = vsub.f32 1.0, %v212
    %v216 = vsub.f32 1.0, %v214
    %v217 = vmul.f32 %v215, 2.0
    %v218 = vmul.f32 %v216, 2.0
    %v219 = vand.u32 2147483647, %v162
    %v220 = vand.u32 2147483647, %v163
    %vm221 = vcmask 261120
    %v222 = vsel %vm221, %v219, 0.0
    %223 = vadd.xlane.f32.xlu0 %v222
    %v224 = vpop.xlane.xlu0 %223
    %v225 = vsel %vm221, %v220, 0.0
    %226 = vadd.xlane.f32.xlu0 %v225
    %v227 = vpop.xlane.xlu0 %226
    %v228 = vmul.f32 %v217, %v224
    %v229 = vmul.f32 %v218, %v227
    %v230 = vadd.f32 %v228, 0.001
    %v231 = vadd.f32 %v229, 0.001
    %v232 = vrcp.pop %v230
    %v233 = vrcp.pop %v231
    %v234 = vmul.f32 %v232, 10000.0
    %v235 = vmul.f32 %v233, 10000.0
    %s236 = sadd.s32 0, 0
    %s237 = smul.u32 %s236, 16
    %v238 = vlaneseq
    %v239 = vshrl.u32 %v238, 7
    %v240 = vadd.s32 %v239, 8
    %v241 = vstv %s237
    %v242 = vadd.s32 %v241, %v239
    %v243 = vadd.s32 %v241, %v240
    %vm244 = vcmp.lt.s32.totalorder %v242, 13
    %vm245 = vcmp.lt.s32.totalorder %v243, 13
    %v246 = vld [vmem:[#allocation3] sm:$0x1]
    %v247 = vsel %vm244, %v207, 0.0
    %v248 = vsel %vm245, %v208, 0.0
    %vm249 = vcmask 7168
    %v250 = vsel %vm249, %v247, 0.0
    %v251 = vsel %vm249, %v248, 0.0
    %v252 = vadd.f32 %v250, %v251
    %253 = vadd.xlane.f32.xlu0 %v252
    %v254 = vpop.xlane.xlu0 %253
    %v255 = vrot.slane %v254, 4
    %v256 = vadd.f32 %v254, %v255
    %v257 = vrot.slane %v256, 2
    %v258 = vadd.f32 %v256, %v257
    %v259 = vrot.slane %v258, 1
    %v260 = vadd.f32 %v258, %v259
    %s261 = vtos %v260
    %v262 = vstv %s261
    %v263 = vadd.f32 %v246, %v262
    %vm264 = vcmask 0
    %265 = vst.msk [vmem:[#allocation3] sm:$0x1] %vm264, %v263
    %v266 = vld [vmem:[#allocation2] sm:$0x1]
    %v267 = vmul.f32 %v160, %v207
    %v268 = vmul.f32 %v161, %v208
    %v269 = vmul.f32 %v267, %v234
    %v270 = vmul.f32 %v268, %v235
    %v271 = vsel %vm244, %v269, 0.0
    %v272 = vsel %vm245, %v270, 0.0
    %v273 = vsel %vm249, %v271, 0.0
    %v274 = vsel %vm249, %v272, 0.0
    %v275 = vadd.f32 %v273, %v274
    %276 = vadd.xlane.f32.xlu0 %v275
    %v277 = vpop.xlane.xlu0 %276
    %v278 = vrot.slane %v277, 4
    %v279 = vadd.f32 %v277, %v278
    %v280 = vrot.slane %v279, 2
    %v281 = vadd.f32 %v279, %v280
    %v282 = vrot.slane %v281, 1
    %v283 = vadd.f32 %v281, %v282
    %s284 = vtos %v283
    %v285 = vstv %s284
    %v286 = vadd.f32 %v266, %v285
    %287 = vst.msk [vmem:[#allocation2] sm:$0x1] %vm264, %v286
    // Predicated region
    $region22: #{tpu_custom_call.1} parent=1 // pred_check
      %p288 = pneg %p149
    $region23: #{tpu_custom_call.1} parent=1 // pred_check_branch
      %290 = sbr.rel (%p288) target = $region25
    $region24: #{tpu_custom_call.1} parent=1 // pred_region
      %v291 = vld [vmem:[#allocation2] sm:$0x1]
      %292 = vst.msk [vmem:[#allocation4] sm:$0x1] %vm264, %v291
      %v293 = vld [vmem:[#allocation3] sm:$0x1]
      %294 = vst.msk [vmem:[#allocation6] sm:$0x1] %vm264, %v293
    $region25: #{tpu_custom_call.1} parent=1 // pred_fallthru
      _
    // Predicated region
    $region26: #{tpu_custom_call.1} parent=1 // pred_check
      _
    $region27: #{tpu_custom_call.1} parent=1 // pred_check_branch
      %296 = sbr.rel (0) target = $region29
    $region28: #{tpu_custom_call.1} parent=1 // pred_region
      %s298 = ssub.s32 16, 16
      %299 = vsyncadd [#allocation5], %s298
      %s301 = sshll.u32 [#allocation4], 4
      %s302 = int_to_ptr.vmem [resolvable:$true] %s301
      %304 = dma.vmem_to_hbm [thread:$0]  %s302, 16, %s4, [#allocation5]
    $region29: #{tpu_custom_call.1} parent=1 // pred_fallthru
      _
    // Predicated region
    $region30: #{tpu_custom_call.1} parent=1 // pred_check
      _
    $region31: #{tpu_custom_call.1} parent=1 // pred_check_branch
      %306 = sbr.rel (0) target = $region33
    $region32: #{tpu_custom_call.1} parent=1 // pred_region
      %s308 = ssub.s32 16, 16
      %309 = vsyncadd [#allocation7], %s308
      %s311 = sshll.u32 [#allocation6], 4
      %s312 = int_to_ptr.vmem [resolvable:$true] %s311
      %314 = dma.vmem_to_hbm [thread:$0]  %s312, 16, %s5, [#allocation7]
    $region33: #{tpu_custom_call.1} parent=1 // pred_fallthru
      _
    // Predicated region
    $region34: #{tpu_custom_call.1} parent=1 // pred_check
      _
    $region35: #{tpu_custom_call.1} parent=1 // pred_check_branch
      %316 = sbr.rel (0) target = $region37
    $region36: #{tpu_custom_call.1} parent=1 // pred_region
      %317 = dma.done [#allocation5], 16
    $region37: #{tpu_custom_call.1} parent=1 // pred_fallthru
      _
    // Predicated region
    $region38: #{tpu_custom_call.1} parent=1 // pred_check
      _
    $region39: #{tpu_custom_call.1} parent=1 // pred_check_branch
      %319 = sbr.rel (0) target = $region41
    $region40: #{tpu_custom_call.1} parent=1 // pred_region
      %320 = dma.done [#allocation7], 16
    $region41: #{tpu_custom_call.1} parent=1 // pred_fallthru
      _
    %321 = vsyncpa [#allocation5], 1
    %322 = vsyncpa [#allocation7], 1

</llo_original>
